<compile_context>
chip_gen: v6e
topology: v6e:2x2x1
jax: 0.10.0
libtpu: 0.0.40
codegen_flags: <defaults>
</compile_context>

<pallas_src>
import functools

import jax
import jax.numpy as jnp
from jax.experimental import pallas as pl
from jax.experimental.pallas import tpu as pltpu

LANE = 128


def _round_up(x, m):
    return (x + m - 1) // m * m


def _mlp_classifier_kernel(x_ref, wh_ref, bh_ref, wc_ref, bc_ref, out_ref):
    """(Linear -> ReLU -> Dropout[eval]) x2 -> Linear, one batch tile per step.

    x_ref  : (TILE_B, D)      bf16 activation tile (pipelined per grid step)
    wh_ref : (2, H, H)        bf16 stacked hidden-layer weights (VMEM-resident)
    bh_ref : (2, 1, H)        f32  stacked hidden-layer biases  (VMEM-resident)
    wc_ref : (H, N_pad)       bf16 classifier weight, lane-padded to 128
    bc_ref : (1, N_pad)       f32  classifier bias,   lane-padded to 128
    out_ref: (TILE_B, N_pad)  f32  lane-dense logits (sliced to n_classes outside)
    """
    x = x_ref[...]  # bf16, fed straight to the MXU

    # Hidden layer 0: Linear + ReLU (Dropout = identity in eval mode).
    h = jnp.dot(x, wh_ref[0], preferred_element_type=jnp.float32) + bh_ref[0]
    h = jnp.maximum(h, 0.0)

    # Hidden layer 1: Linear + ReLU (Dropout = identity in eval mode).
    h = jnp.dot(h.astype(jnp.bfloat16), wh_ref[1],
                preferred_element_type=jnp.float32) + bh_ref[1]
    h = jnp.maximum(h, 0.0)

    # Classifier head: lane-dense (128-wide) unmasked store.
    out_ref[...] = (jnp.dot(h.astype(jnp.bfloat16), wc_ref[...],
                            preferred_element_type=jnp.float32) + bc_ref[...])

    # TODO(synk): training-mode Dropout (stochastic masking via pltpu.prng_*)
    # is intentionally omitted; the reference forward is evaluated in eval mode.


@functools.partial(jax.jit, static_argnames=("tile_b",))
def hidden_classifier_forward(x, w1, b1, w2, b2, wc, bc, *, tile_b=2048):
    """Eval-mode forward of DebugHiddenClassifier as one batch-tiled pallas_call.

    x is [B, gnn_hidden]; weights are stored [in_features, out_features]
    (transposed from PyTorch's nn.Linear) so the kernel does plain x @ W + b.
    """
    B, d_in = x.shape
    hidden = w1.shape[1]
    n_classes = wc.shape[1]
    # config has gnn.hidden_size == classifier.hidden_size, so the two hidden
    # Linear weights stack into a single operand (fewer DMA descriptors).
    assert w1.shape == (d_in, hidden) and w2.shape == (hidden, hidden) == w1.shape

    # Batch tiling: big tiles amortize per-step overhead; multiple of 8 sublanes.
    tile_b = min(tile_b, _round_up(B, 8))
    b_pad = _round_up(B, tile_b)

    # bf16 MXU operands (halves HBM traffic on x); biases / accumulation in f32.
    x_bf = jnp.zeros((b_pad, d_in), jnp.bfloat16).at[:B].set(x.astype(jnp.bfloat16))
    wh = jnp.stack([w1, w2], axis=0).astype(jnp.bfloat16)            # (2, H, H)
    bh = jnp.stack([b1, b2], axis=0).astype(jnp.float32)             # (2, 1, H)

    # Lane-dense classifier head: pad out-features to a multiple of 128.
    n_pad = _round_up(max(n_classes, LANE), LANE)
    wc_p = jnp.zeros((hidden, n_pad), jnp.bfloat16).at[:, :n_classes].set(
        wc.astype(jnp.bfloat16))
    bc_p = jnp.zeros((1, n_pad), jnp.float32).at[:, :n_classes].set(
        bc.astype(jnp.float32))

    grid = (b_pad // tile_b,)
    out = pl.pallas_call(
        _mlp_classifier_kernel,
        out_shape=jax.ShapeDtypeStruct((b_pad, n_pad), jnp.float32),
        grid_spec=pltpu.PrefetchScalarGridSpec(
            num_scalar_prefetch=0,
            grid=grid,
            in_specs=[
                pl.BlockSpec((tile_b, d_in), lambda i: (i, 0)),          # x tile
                pl.BlockSpec((2, hidden, hidden), lambda i: (0, 0, 0)),  # resident
                pl.BlockSpec((2, 1, hidden), lambda i: (0, 0, 0)),       # resident
                pl.BlockSpec((hidden, n_pad), lambda i: (0, 0)),         # resident
                pl.BlockSpec((1, n_pad), lambda i: (0, 0)),              # resident
            ],
            out_specs=pl.BlockSpec((tile_b, n_pad), lambda i: (i, 0)),
        ),
        compiler_params=pltpu.CompilerParams(
            # batch axis is embarrassingly parallel -> v7x can shard it over
            # both TensorCores; no-op on single-TC v5e/v6e.
            dimension_semantics=("parallel",),
        ),
    )(x_bf, wh, bh, wc_p, bc_p)

    return out[:B, :n_classes]


def _init_linear(key, fan_in, fan_out):
    """Deterministic nn.Linear-style init: U(-1/sqrt(fan_in), 1/sqrt(fan_in)).

    Weight returned as [in, out] (transposed from PyTorch), bias as [1, out].
    """
    kw, kb = jax.random.split(key)
    bound = 1.0 / jnp.sqrt(fan_in)
    w = jax.random.uniform(kw, (fan_in, fan_out), jnp.float32, -bound, bound)
    b = jax.random.uniform(kb, (1, fan_out), jnp.float32, -bound, bound)
    return w, b


if __name__ == "__main__":
    # --- config ---
    gnn_hidden = 32        # gnn.hidden_size
    cls_hidden = 32        # classifier.hidden_size
    n_classes = 2          # classifier.n_classes
    # classifier.n_hidden_layers = 2, classifier.drop_out = 0.5 (eval: identity)
    batch = 8

    key = jax.random.PRNGKey(0)
    kx, k1, k2, kc = jax.random.split(key, 4)

    # deterministic synthetic parameters (no checkpoint loading)
    w1, b1 = _init_linear(k1, gnn_hidden, cls_hidden)
    w2, b2 = _init_linear(k2, cls_hidden, cls_hidden)
    wc, bc = _init_linear(kc, cls_hidden, n_classes)

    # deterministic example input: graph_embeddings [B, gnn_hidden]
    graph_embeddings = jax.random.normal(kx, (batch, gnn_hidden), jnp.float32)

    logits = hidden_classifier_forward(graph_embeddings, w1, b1, w2, b2, wc, bc)
    logits = jax.block_until_ready(logits)

    # pure-JAX reference (eval-mode PyTorch semantics) with the same bf16
    # operand rounding the kernel applies before each MXU matmul.
    def _bf(v):
        return v.astype(jnp.bfloat16).astype(jnp.float32)

    h_ref = jnp.maximum(_bf(graph_embeddings) @ _bf(w1) + b1, 0.0)
    h_ref = jnp.maximum(_bf(h_ref) @ _bf(w2) + b2, 0.0)
    logits_ref = _bf(h_ref) @ _bf(wc) + bc

    assert logits.shape == (batch, n_classes)
    assert jnp.allclose(logits, logits_ref, atol=1e-3, rtol=1e-3), (
        float(jnp.max(jnp.abs(logits - logits_ref))))

    print("KERNEL_OK")
</pallas_src>

<mosaic_0001>
module attributes {stable_mosaic.version = 11 : i64} {
  func.func @_mlp_classifier_kernel(%arg0: i32, %arg1: memref<8x32xbf16, #tpu.memory_space<vmem>>, %arg2: memref<2x32x32xbf16, #tpu.memory_space<vmem>>, %arg3: memref<2x1x32xf32, #tpu.memory_space<vmem>>, %arg4: memref<32x128xbf16, #tpu.memory_space<vmem>>, %arg5: memref<1x128xf32, #tpu.memory_space<vmem>>, %arg6: memref<8x128xf32, #tpu.memory_space<vmem>>) attributes {dimension_semantics = [#tpu.dimension_semantics<parallel>], iteration_bounds = array<i64: 1>, scalar_prefetch = 0 : i64, scratch_operands = 0 : i64, tpu.core_type = #tpu.core_type<tc>, window_params = [{transform_indices = @transform_0, window_bounds = array<i64: 8, 32>}, {pipeline_mode = #tpu.pipeline_mode<synchronous>, transform_indices = @transform_1, window_bounds = array<i64: 2, 32, 32>}, {pipeline_mode = #tpu.pipeline_mode<synchronous>, transform_indices = @transform_2, window_bounds = array<i64: 2, 1, 32>}, {pipeline_mode = #tpu.pipeline_mode<synchronous>, transform_indices = @transform_3, window_bounds = array<i64: 32, 128>}, {pipeline_mode = #tpu.pipeline_mode<synchronous>, transform_indices = @transform_4, window_bounds = array<i64: 1, 128>}, {transform_indices = @transform_5, window_bounds = array<i64: 8, 128>}]} {
    %c0 = arith.constant 0 : index
    %c0_0 = arith.constant 0 : index
    %0 = vector.load %arg1[%c0, %c0_0] : memref<8x32xbf16, #tpu.memory_space<vmem>>, vector<8x32xbf16>
    %c0_1 = arith.constant 0 : index
    %c0_2 = arith.constant 0 : index
    %c0_3 = arith.constant 0 : index
    %1 = vector.load %arg2[%c0_1, %c0_2, %c0_3] : memref<2x32x32xbf16, #tpu.memory_space<vmem>>, vector<1x32x32xbf16>
    %2 = vector.shape_cast %1 : vector<1x32x32xbf16> to vector<32x32xbf16>
    %cst = arith.constant dense<0.000000e+00> : vector<8x32xf32>
    %3 = tpu.matmul %0, %2, %cst {dimension_numbers = #tpu.dot_dimension_numbers<[1], [0], [0], [1], [0, 0, 1, 1], [], []>} : vector<8x32xbf16>, vector<32x32xbf16>, vector<8x32xf32> -> vector<8x32xf32>
    %c0_4 = arith.constant 0 : index
    %c0_5 = arith.constant 0 : index
    %c0_6 = arith.constant 0 : index
    %4 = vector.load %arg3[%c0_4, %c0_5, %c0_6] : memref<2x1x32xf32, #tpu.memory_space<vmem>>, vector<1x1x32xf32>
    %5 = vector.shape_cast %4 : vector<1x1x32xf32> to vector<1x32xf32>
    %6 = vector.broadcast %5 : vector<1x32xf32> to vector<8x32xf32>
    %7 = arith.addf %3, %6 : vector<8x32xf32>
    %cst_7 = arith.constant 0.000000e+00 : f32
    %8 = vector.broadcast %cst_7 : f32 to vector<8x32xf32>
    %9 = arith.maximumf %7, %8 : vector<8x32xf32>
    %10 = arith.truncf %9 : vector<8x32xf32> to vector<8x32xbf16>
    %c1 = arith.constant 1 : index
    %c0_8 = arith.constant 0 : index
    %c0_9 = arith.constant 0 : index
    %11 = vector.load %arg2[%c1, %c0_8, %c0_9] : memref<2x32x32xbf16, #tpu.memory_space<vmem>>, vector<1x32x32xbf16>
    %12 = vector.shape_cast %11 : vector<1x32x32xbf16> to vector<32x32xbf16>
    %cst_10 = arith.constant dense<0.000000e+00> : vector<8x32xf32>
    %13 = tpu.matmul %10, %12, %cst_10 {dimension_numbers = #tpu.dot_dimension_numbers<[1], [0], [0], [1], [0, 0, 1, 1], [], []>} : vector<8x32xbf16>, vector<32x32xbf16>, vector<8x32xf32> -> vector<8x32xf32>
    %c1_11 = arith.constant 1 : index
    %c0_12 = arith.constant 0 : index
    %c0_13 = arith.constant 0 : index
    %14 = vector.load %arg3[%c1_11, %c0_12, %c0_13] : memref<2x1x32xf32, #tpu.memory_space<vmem>>, vector<1x1x32xf32>
    %15 = vector.shape_cast %14 : vector<1x1x32xf32> to vector<1x32xf32>
    %16 = vector.broadcast %15 : vector<1x32xf32> to vector<8x32xf32>
    %17 = arith.addf %13, %16 : vector<8x32xf32>
    %cst_14 = arith.constant 0.000000e+00 : f32
    %18 = vector.broadcast %cst_14 : f32 to vector<8x32xf32>
    %19 = arith.maximumf %17, %18 : vector<8x32xf32>
    %20 = arith.truncf %19 : vector<8x32xf32> to vector<8x32xbf16>
    %c0_15 = arith.constant 0 : index
    %c0_16 = arith.constant 0 : index
    %21 = vector.load %arg4[%c0_15, %c0_16] : memref<32x128xbf16, #tpu.memory_space<vmem>>, vector<32x128xbf16>
    %cst_17 = arith.constant dense<0.000000e+00> : vector<8x128xf32>
    %22 = tpu.matmul %20, %21, %cst_17 {dimension_numbers = #tpu.dot_dimension_numbers<[1], [0], [0], [1], [0, 0, 1, 1], [], []>} : vector<8x32xbf16>, vector<32x128xbf16>, vector<8x128xf32> -> vector<8x128xf32>
    %c0_18 = arith.constant 0 : index
    %c0_19 = arith.constant 0 : index
    %23 = vector.load %arg5[%c0_18, %c0_19] : memref<1x128xf32, #tpu.memory_space<vmem>>, vector<1x128xf32>
    %24 = vector.broadcast %23 : vector<1x128xf32> to vector<8x128xf32>
    %25 = arith.addf %22, %24 : vector<8x128xf32>
    %c0_20 = arith.constant 0 : index
    %c0_21 = arith.constant 0 : index
    %26 = vector.load %arg6[%c0_20, %c0_21] : memref<8x128xf32, #tpu.memory_space<vmem>>, vector<8x128xf32>
    tpu.vector_store %arg6[%c0_20, %c0_21], %25 {strides = array<i32>} : memref<8x128xf32, #tpu.memory_space<vmem>>, vector<8x128xf32>,
    return
  }
  func.func @transform_0(%arg0: i32) -> (i32, i32) {
    %c0_i32 = arith.constant 0 : i32
    %c0_i32_0 = arith.constant 0 : i32
    return %arg0, %c0_i32 : i32, i32
  }
  func.func @transform_1(%arg0: i32) -> (i32, i32, i32) {
    %c0_i32 = arith.constant 0 : i32
    %c0_i32_0 = arith.constant 0 : i32
    %c0_i32_1 = arith.constant 0 : i32
    %c0_i32_2 = arith.constant 0 : i32
    return %c0_i32, %c0_i32_0, %c0_i32_1 : i32, i32, i32
  }
  func.func @transform_2(%arg0: i32) -> (i32, i32, i32) {
    %c0_i32 = arith.constant 0 : i32
    %c0_i32_0 = arith.constant 0 : i32
    %c0_i32_1 = arith.constant 0 : i32
    %c0_i32_2 = arith.constant 0 : i32
    return %c0_i32, %c0_i32_0, %c0_i32_1 : i32, i32, i32
  }
  func.func @transform_3(%arg0: i32) -> (i32, i32) {
    %c0_i32 = arith.constant 0 : i32
    %c0_i32_0 = arith.constant 0 : i32
    %c0_i32_1 = arith.constant 0 : i32
    return %c0_i32, %c0_i32_0 : i32, i32
  }
  func.func @transform_4(%arg0: i32) -> (i32, i32) {
    %c0_i32 = arith.constant 0 : i32
    %c0_i32_0 = arith.constant 0 : i32
    %c0_i32_1 = arith.constant 0 : i32
    return %c0_i32, %c0_i32_0 : i32, i32
  }
  func.func @transform_5(%arg0: i32) -> (i32, i32) {
    %c0_i32 = arith.constant 0 : i32
    %c0_i32_0 = arith.constant 0 : i32
    return %arg0, %c0_i32 : i32, i32
  }
}

</mosaic_0001>

<llo_original>
// kernel: hidden_classifier_forward.1
$region0: #{hidden_classifier_forward.1}
  #allocation0 [shape = 'u32[]', space=smem, size = 0x4, offset = 0x4, fixed_abs, tag = 'smem constant byte address 0x4 - core index']
  #allocation1 [shape = 'u32[144,128]{1,0:T(1,128)}', space=vmem, size = 0x12000, scoped, tag = 'internal scratch']
  %s0 = inlined_call_operand.vmem [shape: bf16[8,32], index: 0, kind: input, shape index: {}]
  %s1 = inlined_call_operand.vmem [shape: bf16[2,32,32], index: 1, kind: input, shape index: {}]
  %s2 = inlined_call_operand.vmem [shape: f32[2,1,32], index: 2, kind: input, shape index: {}]
  %s3 = inlined_call_operand.vmem [shape: bf16[32,128], index: 3, kind: input, shape index: {}]
  %s4 = inlined_call_operand.vmem [shape: f32[1,128], index: 4, kind: input, shape index: {}]
  %s5 = inlined_call_operand.vmem [shape: f32[8,128], index: 5, kind: output, shape index: {}]
  %s6 = sld [smem:[#allocation0]]
  $region30: #{hidden_classifier_forward.1} parent=0
    _
  %s8 = ssub.s32 1, %s6
  %s9 = scalar_select 0, %s8, %s6
  // Predicated region
  $region2: #{hidden_classifier_forward.1} parent=0 // pred_check
    _
  $region3: #{hidden_classifier_forward.1} parent=0 // pred_check_branch
    %11 = sbr.rel (0) target = $region5
  $region4: #{hidden_classifier_forward.1} parent=0 // pred_region
    _
  $region5: #{hidden_classifier_forward.1} parent=0 // pred_fallthru
    _
  // Predicated region
  $region6: #{hidden_classifier_forward.1} parent=0 // pred_check
    _
  $region7: #{hidden_classifier_forward.1} parent=0 // pred_check_branch
    %13 = sbr.rel (0) target = $region9
  $region8: #{hidden_classifier_forward.1} parent=0 // pred_region
    _
  $region9: #{hidden_classifier_forward.1} parent=0 // pred_fallthru
    _
  // Predicated region
  $region10: #{hidden_classifier_forward.1} parent=0 // pred_check
    _
  $region11: #{hidden_classifier_forward.1} parent=0 // pred_check_branch
    %15 = sbr.rel (0) target = $region13
  $region12: #{hidden_classifier_forward.1} parent=0 // pred_region
    _
  $region13: #{hidden_classifier_forward.1} parent=0 // pred_fallthru
    _
  // Predicated region
  $region14: #{hidden_classifier_forward.1} parent=0 // pred_check
    _
  $region15: #{hidden_classifier_forward.1} parent=0 // pred_check_branch
    %17 = sbr.rel (0) target = $region17
  $region16: #{hidden_classifier_forward.1} parent=0 // pred_region
    _
  $region17: #{hidden_classifier_forward.1} parent=0 // pred_fallthru
    _
  // Predicated region
  $region18: #{hidden_classifier_forward.1} parent=0 // pred_check
    _
  $region19: #{hidden_classifier_forward.1} parent=0 // pred_check_branch
    %19 = sbr.rel (0) target = $region21
  $region20: #{hidden_classifier_forward.1} parent=0 // pred_region
    _
  $region21: #{hidden_classifier_forward.1} parent=0 // pred_fallthru
    _
  %v21 = vld [vmem:[%s0] sm:$0xf]
  %v22 = vld [vmem:[%s1] sm:$0xf]
  %v23 = vld [vmem:[%s1 + $0x4] sm:$0xf]
  %v24 = vld [vmem:[%s1 + $0x8] sm:$0xf]
  %v25 = vld [vmem:[%s1 + $0xc] sm:$0xf]
  %v26 = vld [vmem:[%s2] sm:$0x1]
  %v28 = vlaneseq
  %v29 = vshrl.u32 %v28, 7
  %v30 = vsub.s32 0, %v29
  %v31 = vrot.slane %v26, %v30
  %v37 = vunpack.c.l.b16 %v22
  %v38 = vunpack.c.l.b16 %v23
  %v39 = vunpack.c.l.b16 %v24
  %v40 = vunpack.c.l.b16 %v25
  %v41 = vpack.c.b16 %v38, %v37
  %v42 = vpack.c.b16 %v40, %v39
  %vm45 = vcmask 261120
  %v47 = vsel %vm45, %v21, 0
  %49 = vmatprep.subr.bf16.mxu0 0
  %50 = vmatpush1.bf16.msra.mxu0 0
  %51 = vmatprep.subr.bf16.mxu0 0
  %52 = vmatpush1.bf16.msra.mxu0 0
  %53 = vmatprep.subr.bf16.mxu0 0
  %54 = vmatpush1.bf16.msra.mxu0 0
  %55 = vmatprep.subr.bf16.mxu0 0
  %56 = vmatpush1.bf16.msra.mxu0 0
  %57 = vmatprep.subr.bf16.mxu0 0
  %58 = vmatpush1.bf16.msra.mxu0 0
  %59 = vmatprep.subr.bf16.mxu0 0
  %60 = vmatpush1.bf16.msra.mxu0 0
  %61 = vmatprep.subr.bf16.mxu0 0
  %62 = vmatpush1.bf16.msra.mxu0 %v42
  %63 = vmatprep.subr.bf16.mxu0 0
  %64 = vmatpush1.bf16.msra.mxu0 %v41
  %65 = vmatprep.subr.bf16.mxu0 0
  %66 = vmatpush2.bf16.msra.mxu0 0
  %67 = vmatprep.subr.bf16.mxu0 0
  %68 = vmatpush2.bf16.msra.mxu0 0
  %69 = vmatprep.subr.bf16.mxu0 0
  %70 = vmatpush2.bf16.msra.mxu0 0
  %71 = vmatprep.subr.bf16.mxu0 0
  %72 = vmatpush2.bf16.msra.mxu0 0
  %73 = vmatprep.subr.bf16.mxu0 0
  %74 = vmatpush2.bf16.msra.mxu0 0
  %75 = vmatprep.subr.bf16.mxu0 0
  %76 = vmatpush2.bf16.msra.mxu0 0
  %77 = vmatprep.subr.bf16.mxu0 0
  %78 = vmatpush2.bf16.msra.mxu0 0
  %79 = vmatprep.subr.bf16.mxu0 0
  %80 = vmatpush2.bf16.msra.mxu0 0
  %81 = vmatprep.mubr.bf16.mxu0 0
  %82 = vmatmul.mubr.bf16.gmra.mxu0 %v47
  %v83 = vpop.f32.mrf.mxu0
  %v84 = vadd.f32 %v31, %v83
  %v85 = vpop.f32.mrf.mxu0
  %v86 = vpop.f32.mrf.mxu0
  %v87 = vpop.f32.mrf.mxu0
  %88 = vdwg.mxu0
  %v89 = vmax.f32 %v84, 0.0
  %v90 = vpack.c.bf16 %v89, %v89
  %s91 = scalar_lea.vmem %s1, 16
  %v92 = vld [vmem:[%s91] sm:$0xf]
  %v93 = vld [vmem:[%s91 + $0x4] sm:$0xf]
  %v94 = vld [vmem:[%s91 + $0x8] sm:$0xf]
  %v95 = vld [vmem:[%s91 + $0xc] sm:$0xf]
  %s96 = scalar_lea.vmem %s2, 1
  %v97 = vld [vmem:[%s96] sm:$0x1]
  %v99 = vlaneseq
  %v100 = vshrl.u32 %v99, 7
  %v101 = vsub.s32 0, %v100
  %v102 = vrot.slane %v97, %v101
  %v108 = vunpack.c.l.b16 %v92
  %v109 = vunpack.c.l.b16 %v93
  %v110 = vunpack.c.l.b16 %v94
  %v111 = vunpack.c.l.b16 %v95
  %v112 = vpack.c.b16 %v109, %v108
  %v113 = vpack.c.b16 %v111, %v110
  %v117 = vsel %vm45, %v90, 0
  %119 = vmatprep.subr.bf16.mxu0 0
  %120 = vmatpush1.bf16.msra.mxu0 0
  %121 = vmatprep.subr.bf16.mxu0 0
  %122 = vmatpush1.bf16.msra.mxu0 0
  %123 = vmatprep.subr.bf16.mxu0 0
  %124 = vmatpush1.bf16.msra.mxu0 0
  %125 = vmatprep.subr.bf16.mxu0 0
  %126 = vmatpush1.bf16.msra.mxu0 0
  %127 = vmatprep.subr.bf16.mxu0 0
  %128 = vmatpush1.bf16.msra.mxu0 0
  %129 = vmatprep.subr.bf16.mxu0 0
  %130 = vmatpush1.bf16.msra.mxu0 0
  %131 = vmatprep.subr.bf16.mxu0 0
  %132 = vmatpush1.bf16.msra.mxu0 %v113
  %133 = vmatprep.subr.bf16.mxu0 0
  %134 = vmatpush1.bf16.msra.mxu0 %v112
  %135 = vmatprep.subr.bf16.mxu0 0
  %136 = vmatpush2.bf16.msra.mxu0 0
  %137 = vmatprep.subr.bf16.mxu0 0
  %138 = vmatpush2.bf16.msra.mxu0 0
  %139 = vmatprep.subr.bf16.mxu0 0
  %140 = vmatpush2.bf16.msra.mxu0 0
  %141 = vmatprep.subr.bf16.mxu0 0
  %142 = vmatpush2.bf16.msra.mxu0 0
  %143 = vmatprep.subr.bf16.mxu0 0
  %144 = vmatpush2.bf16.msra.mxu0 0
  %145 = vmatprep.subr.bf16.mxu0 0
  %146 = vmatpush2.bf16.msra.mxu0 0
  %147 = vmatprep.subr.bf16.mxu0 0
  %148 = vmatpush2.bf16.msra.mxu0 0
  %149 = vmatprep.subr.bf16.mxu0 0
  %150 = vmatpush2.bf16.msra.mxu0 0
  %151 = vmatprep.mubr.bf16.mxu0 0
  %152 = vmatmul.mubr.bf16.gmra.mxu0 %v117
  %v153 = vpop.f32.mrf.mxu0
  %v154 = vadd.f32 %v102, %v153
  %v155 = vpop.f32.mrf.mxu0
  %v156 = vpop.f32.mrf.mxu0
  %v157 = vpop.f32.mrf.mxu0
  %158 = vdwg.mxu0
  %v159 = vmax.f32 %v154, 0.0
  %v160 = vpack.c.bf16 %v159, %v159
  %v161 = vld [vmem:[%s3] sm:$0xf]
  %v162 = vld [vmem:[%s3 + $0x4] sm:$0xf]
  %v163 = vld [vmem:[%s3 + $0x8] sm:$0xf]
  %v164 = vld [vmem:[%s3 + $0xc] sm:$0xf]
  %v165 = vld [vmem:[%s4] sm:$0x1]
  %v167 = vlaneseq
  %v168 = vshrl.u32 %v167, 7
  %v169 = vsub.s32 0, %v168
  %v170 = vrot.slane %v165, %v169
  %v176 = vunpack.c.l.b16 %v161
  %v177 = vunpack.c.l.b16 %v162
  %v178 = vunpack.c.l.b16 %v163
  %v179 = vunpack.c.l.b16 %v164
  %v180 = vpack.c.b16 %v177, %v176
  %v181 = vpack.c.b16 %v179, %v178
  %v185 = vsel %vm45, %v160, 0
  %187 = vmatprep.subr.bf16.mxu0 0
  %188 = vmatpush1.bf16.msra.mxu0 0
  %189 = vmatprep.subr.bf16.mxu0 0
  %190 = vmatpush1.bf16.msra.mxu0 0
  %191 = vmatprep.subr.bf16.mxu0 0
  %192 = vmatpush1.bf16.msra.mxu0 0
  %193 = vmatprep.subr.bf16.mxu0 0
  %194 = vmatpush1.bf16.msra.mxu0 0
  %195 = vmatprep.subr.bf16.mxu0 0
  %196 = vmatpush1.bf16.msra.mxu0 0
  %197 = vmatprep.subr.bf16.mxu0 0
  %198 = vmatpush1.bf16.msra.mxu0 0
  %199 = vmatprep.subr.bf16.mxu0 0
  %200 = vmatpush1.bf16.msra.mxu0 %v181
  %201 = vmatprep.subr.bf16.mxu0 0
  %202 = vmatpush1.bf16.msra.mxu0 %v180
  %203 = vmatprep.subr.bf16.mxu0 0
  %204 = vmatpush2.bf16.msra.mxu0 0
  %205 = vmatprep.subr.bf16.mxu0 0
  %206 = vmatpush2.bf16.msra.mxu0 0
  %207 = vmatprep.subr.bf16.mxu0 0
  %208 = vmatpush2.bf16.msra.mxu0 0
  %209 = vmatprep.subr.bf16.mxu0 0
  %210 = vmatpush2.bf16.msra.mxu0 0
  %211 = vmatprep.subr.bf16.mxu0 0
  %212 = vmatpush2.bf16.msra.mxu0 0
  %213 = vmatprep.subr.bf16.mxu0 0
  %214 = vmatpush2.bf16.msra.mxu0 0
  %215 = vmatprep.subr.bf16.mxu0 0
  %216 = vmatpush2.bf16.msra.mxu0 0
  %217 = vmatprep.subr.bf16.mxu0 0
  %218 = vmatpush2.bf16.msra.mxu0 0
  %219 = vmatprep.mubr.bf16.mxu0 0
  %220 = vmatmul.mubr.bf16.gmra.mxu0 %v185
  %v221 = vpop.f32.mrf.mxu0
  %v222 = vadd.f32 %v170, %v221
  %v223 = vpop.f32.mrf.mxu0
  %v224 = vpop.f32.mrf.mxu0
  %v225 = vpop.f32.mrf.mxu0
  %226 = vdwg.mxu0
  %227 = vst [vmem:[%s5] sm:$0xff] %v222
  // Predicated region
  $region22: #{hidden_classifier_forward.1} parent=0 // pred_check
    _
  $region23: #{hidden_classifier_forward.1} parent=0 // pred_check_branch
    %229 = sbr.rel (0) target = $region25
  $region24: #{hidden_classifier_forward.1} parent=0 // pred_region
    _
  $region25: #{hidden_classifier_forward.1} parent=0 // pred_fallthru
    _
  // Predicated region
  $region26: #{hidden_classifier_forward.1} parent=0 // pred_check
    _
  $region27: #{hidden_classifier_forward.1} parent=0 // pred_check_branch
    %231 = sbr.rel (0) target = $region29
  $region28: #{hidden_classifier_forward.1} parent=0 // pred_region
    _
  $region29: #{hidden_classifier_forward.1} parent=0 // pred_fallthru
    _

</llo_original>
